<compile_context>
chip_gen: v5e
topology: v5e:2x2
jax: 0.10.0
libtpu: 0.0.40
codegen_flags: <defaults>
</compile_context>

<pallas_src>
import functools

import jax
import jax.numpy as jnp
from jax.experimental import pallas as pl
from jax.experimental.pallas import tpu as pltpu


def _round_up(n: int, m: int) -> int:
    return ((n + m - 1) // m) * m


def _mlp_kernel(x_ref, w1_ref, b1_ref, w2_ref, b2_ref, out_ref):
    # Cast x to the MXU-input (weight) dtype in-kernel; no-op for fp32,
    # hidden under the matmul for bf16 (saves a wrapper-side HBM pass).
    x = x_ref[...].astype(w1_ref.dtype)
    # Hidden layer: (TB, F) @ (F, H) on the MXU, fp32 accumulation.
    h = jnp.dot(x, w1_ref[...], preferred_element_type=jnp.float32)
    # Bias + ReLU epilogue in fp32 on the VPU (v5e has no bf16 VPU datapath).
    h = jnp.maximum(h + b1_ref[...], 0.0)
    # Output layer: cast activation to the weight dtype for the MXU,
    # accumulate in fp32.
    y = jnp.dot(h.astype(w2_ref.dtype), w2_ref[...],
                preferred_element_type=jnp.float32)
    out_ref[...] = (y + b2_ref[...]).astype(out_ref.dtype)


def prepare_params(w1, b1, w2, b2, mxu_dtype=None):
    """One-time (per model, not per call) weight prep.

    Optionally casts the matmul weights to `mxu_dtype` (e.g. jnp.bfloat16) for
    the MXU; biases stay fp32 for the epilogue.  Call this once at init so the
    cast never sits on the per-forward-call path.
    """
    if mxu_dtype is not None:
        w1 = w1.astype(mxu_dtype)
        w2 = w2.astype(mxu_dtype)
    return w1, b1, w2, b2


@functools.partial(jax.jit, static_argnames=("block_b",))
def mlp_forward(x, w1, b1, w2, b2, *, block_b: int = 2048):
    """Forward pass of `Net`.

    x : (B, F)  float32
    w1: (F, H), b1: (1, H) float32
    w2: (H, O), b2: (1, O);  w1/w2 may be bf16 (see prepare_params).
    block_b: max batch tile size (rounded to the sublane granularity).
    """
    B, F = x.shape
    H = w1.shape[1]
    O = w2.shape[1]

    # Sublane granularity for the batch tile: bf16 packs 16 rows per vreg.
    sub = 16 if w1.dtype == jnp.bfloat16 else 8

    # Batch tile: as large as allowed (per-grid-step overhead dominates at
    # small tiles), but capped at half the rounded batch so there are always
    # >=2 grid steps for the two v7x TensorCores when the batch allows it.
    tb = _round_up(min(block_b, B), sub)
    if B >= 2 * sub:
        tb = min(tb, _round_up(B, 2 * sub) // 2)
    Bp = _round_up(B, tb)
    num_tiles = Bp // tb

    # Only the batch dim is padded (to a tile multiple); zero rows are exact
    # and sliced off below.  No feature/hidden/output padding in HBM.
    x_p = jnp.pad(x, ((0, Bp - B), (0, 0))) if Bp != B else x

    nbytes = lambda a: a.size * a.dtype.itemsize
    cost = pl.CostEstimate(
        flops=2 * Bp * F * H + 2 * Bp * H * O,
        transcendentals=0,
        bytes_accessed=(nbytes(x_p) + nbytes(w1) + nbytes(b1)
                        + nbytes(w2) + nbytes(b2) + Bp * O * 4),
    )

    # Weights/biases use a constant index_map: fetched once, resident in VMEM
    # across all batch tiles.  x/out tiles stream (prefetch i+1 / compute i /
    # writeback i-1).
    out_p = pl.pallas_call(
        _mlp_kernel,
        out_shape=jax.ShapeDtypeStruct((Bp, O), jnp.float32),
        grid=(num_tiles,),
        in_specs=[
            pl.BlockSpec((tb, F), lambda i: (i, 0)),   # x tiles stream
            pl.BlockSpec((F, H), lambda i: (0, 0)),    # W1 resident
            pl.BlockSpec((1, H), lambda i: (0, 0)),    # b1 resident
            pl.BlockSpec((H, O), lambda i: (0, 0)),    # W2 resident
            pl.BlockSpec((1, O), lambda i: (0, 0)),    # b2 resident
        ],
        out_specs=pl.BlockSpec((tb, O), lambda i: (i, 0)),
        compiler_params=pltpu.CompilerParams(
            dimension_semantics=("parallel",)),
        cost_estimate=cost,
    )(x_p, w1, b1, w2, b2)

    return out_p[:B]


def init_params(key, n_feature, size_hidden, n_output):
    """Deterministic init mimicking nn.Linear's uniform(-1/sqrt(fan_in), ...)."""
    k1, k2, k3, k4 = jax.random.split(key, 4)
    bound1 = 1.0 / jnp.sqrt(n_feature)
    bound2 = 1.0 / jnp.sqrt(size_hidden)
    # Stored as (in, out) so the kernel computes x @ W.
    w1 = jax.random.uniform(k1, (n_feature, size_hidden), jnp.float32,
                            -bound1, bound1)
    b1 = jax.random.uniform(k2, (1, size_hidden), jnp.float32, -bound1, bound1)
    w2 = jax.random.uniform(k3, (size_hidden, n_output), jnp.float32,
                            -bound2, bound2)
    b2 = jax.random.uniform(k4, (1, n_output), jnp.float32, -bound2, bound2)
    return w1, b1, w2, b2


if __name__ == "__main__":
    # Small shapes consistent with the module: n_feature=16, size_hidden=32,
    # n_output=4.
    F, H, O = 16, 32, 4

    key = jax.random.PRNGKey(0)
    kx1, kx2, kp = jax.random.split(key, 3)
    w1, b1, w2, b2 = init_params(kp, F, H, O)

    def ref_fwd(x):
        return jnp.maximum(x @ w1 + b1, 0.0) @ w2 + b2

    # 1) fp32 MXU path, tiny batch (single grid step) — exact.
    B = 8
    x = jax.random.normal(kx1, (B, F), dtype=jnp.float32)
    out = jax.block_until_ready(mlp_forward(x, w1, b1, w2, b2))
    assert out.shape == (B, O)
    assert jnp.allclose(out, ref_fwd(x), atol=1e-5, rtol=1e-5)

    # 2) bf16 MXU path (weights cast once at init via prepare_params, x cast
    #    in-kernel), ragged multi-tile batch exercising batch padding and the
    #    >=2-grid-step cap.  Looser tolerance for bf16 matmul inputs.
    w1b, b1b, w2b, b2b = prepare_params(w1, b1, w2, b2,
                                        mxu_dtype=jnp.bfloat16)
    B2 = 300
    x2 = jax.random.normal(kx2, (B2, F), dtype=jnp.float32)
    out2 = jax.block_until_ready(
        mlp_forward(x2, w1b, b1b, w2b, b2b, block_b=2048))
    assert out2.shape == (B2, O)
    assert jnp.allclose(out2, ref_fwd(x2), atol=3e-2, rtol=3e-2)

    print("KERNEL_OK")
</pallas_src>

<mosaic_0001>
module attributes {stable_mosaic.version = 11 : i64} {
  func.func @_mlp_kernel(%arg0: i32, %arg1: memref<8x16xf32, #tpu.memory_space<vmem>>, %arg2: memref<16x32xf32, #tpu.memory_space<vmem>>, %arg3: memref<1x32xf32, #tpu.memory_space<vmem>>, %arg4: memref<32x4xf32, #tpu.memory_space<vmem>>, %arg5: memref<1x4xf32, #tpu.memory_space<vmem>>, %arg6: memref<8x4xf32, #tpu.memory_space<vmem>>) attributes {dimension_semantics = [#tpu.dimension_semantics<parallel>], iteration_bounds = array<i64: 1>, scalar_prefetch = 0 : i64, scratch_operands = 0 : i64, tpu.core_type = #tpu.core_type<tc>, window_params = [{transform_indices = @transform_0, window_bounds = array<i64: 8, 16>}, {pipeline_mode = #tpu.pipeline_mode<synchronous>, transform_indices = @transform_1, window_bounds = array<i64: 16, 32>}, {pipeline_mode = #tpu.pipeline_mode<synchronous>, transform_indices = @transform_2, window_bounds = array<i64: 1, 32>}, {pipeline_mode = #tpu.pipeline_mode<synchronous>, transform_indices = @transform_3, window_bounds = array<i64: 32, 4>}, {pipeline_mode = #tpu.pipeline_mode<synchronous>, transform_indices = @transform_4, window_bounds = array<i64: 1, 4>}, {transform_indices = @transform_5, window_bounds = array<i64: 8, 4>}]} {
    %c0 = arith.constant 0 : index
    %c0_0 = arith.constant 0 : index
    %0 = vector.load %arg1[%c0, %c0_0] : memref<8x16xf32, #tpu.memory_space<vmem>>, vector<8x16xf32>
    %c0_1 = arith.constant 0 : index
    %c0_2 = arith.constant 0 : index
    %1 = vector.load %arg2[%c0_1, %c0_2] : memref<16x32xf32, #tpu.memory_space<vmem>>, vector<16x32xf32>
    %cst = arith.constant dense<0.000000e+00> : vector<8x32xf32>
    %2 = tpu.matmul %0, %1, %cst {dimension_numbers = #tpu.dot_dimension_numbers<[1], [0], [0], [1], [0, 0, 1, 1], [], []>} : vector<8x16xf32>, vector<16x32xf32>, vector<8x32xf32> -> vector<8x32xf32>
    %c0_3 = arith.constant 0 : index
    %c0_4 = arith.constant 0 : index
    %3 = vector.load %arg3[%c0_3, %c0_4] : memref<1x32xf32, #tpu.memory_space<vmem>>, vector<1x32xf32>
    %4 = vector.broadcast %3 : vector<1x32xf32> to vector<8x32xf32>
    %5 = arith.addf %2, %4 : vector<8x32xf32>
    %cst_5 = arith.constant 0.000000e+00 : f32
    %6 = vector.broadcast %cst_5 : f32 to vector<8x32xf32>
    %7 = arith.maximumf %5, %6 : vector<8x32xf32>
    %c0_6 = arith.constant 0 : index
    %c0_7 = arith.constant 0 : index
    %8 = vector.load %arg4[%c0_6, %c0_7] : memref<32x4xf32, #tpu.memory_space<vmem>>, vector<32x4xf32>
    %cst_8 = arith.constant dense<0.000000e+00> : vector<8x4xf32>
    %9 = tpu.matmul %7, %8, %cst_8 {dimension_numbers = #tpu.dot_dimension_numbers<[1], [0], [0], [1], [0, 0, 1, 1], [], []>} : vector<8x32xf32>, vector<32x4xf32>, vector<8x4xf32> -> vector<8x4xf32>
    %c0_9 = arith.constant 0 : index
    %c0_10 = arith.constant 0 : index
    %10 = vector.load %arg5[%c0_9, %c0_10] : memref<1x4xf32, #tpu.memory_space<vmem>>, vector<1x4xf32>
    %11 = vector.broadcast %10 : vector<1x4xf32> to vector<8x4xf32>
    %12 = arith.addf %9, %11 : vector<8x4xf32>
    %c0_11 = arith.constant 0 : index
    %c0_12 = arith.constant 0 : index
    %13 = vector.load %arg6[%c0_11, %c0_12] : memref<8x4xf32, #tpu.memory_space<vmem>>, vector<8x4xf32>
    tpu.vector_store %arg6[%c0_11, %c0_12], %12 {strides = array<i32>} : memref<8x4xf32, #tpu.memory_space<vmem>>, vector<8x4xf32>,
    return
  }
  func.func @transform_0(%arg0: i32) -> (i32, i32) {
    %c0_i32 = arith.constant 0 : i32
    %c0_i32_0 = arith.constant 0 : i32
    return %arg0, %c0_i32 : i32, i32
  }
  func.func @transform_1(%arg0: i32) -> (i32, i32) {
    %c0_i32 = arith.constant 0 : i32
    %c0_i32_0 = arith.constant 0 : i32
    %c0_i32_1 = arith.constant 0 : i32
    return %c0_i32, %c0_i32_0 : i32, i32
  }
  func.func @transform_2(%arg0: i32) -> (i32, i32) {
    %c0_i32 = arith.constant 0 : i32
    %c0_i32_0 = arith.constant 0 : i32
    %c0_i32_1 = arith.constant 0 : i32
    return %c0_i32, %c0_i32_0 : i32, i32
  }
  func.func @transform_3(%arg0: i32) -> (i32, i32) {
    %c0_i32 = arith.constant 0 : i32
    %c0_i32_0 = arith.constant 0 : i32
    %c0_i32_1 = arith.constant 0 : i32
    return %c0_i32, %c0_i32_0 : i32, i32
  }
  func.func @transform_4(%arg0: i32) -> (i32, i32) {
    %c0_i32 = arith.constant 0 : i32
    %c0_i32_0 = arith.constant 0 : i32
    %c0_i32_1 = arith.constant 0 : i32
    return %c0_i32, %c0_i32_0 : i32, i32
  }
  func.func @transform_5(%arg0: i32) -> (i32, i32) {
    %c0_i32 = arith.constant 0 : i32
    %c0_i32_0 = arith.constant 0 : i32
    return %arg0, %c0_i32 : i32, i32
  }
}

</mosaic_0001>

<llo_original>
// kernel: mlp_forward.1
$region0: #{mlp_forward.1}
  #allocation0 [shape = 'u32[]', space=smem, size = 0x4, offset = 0x4, fixed_abs, tag = 'smem constant byte address 0x4 - core index']
  #allocation1 [shape = 'u32[72,128]{1,0:T(1,128)}', space=vmem, size = 0x9000, scoped, tag = 'internal scratch']
  %s0 = inlined_call_operand.vmem [shape: f32[8,16], index: 0, kind: input, shape index: {}]
  %s1 = inlined_call_operand.vmem [shape: f32[16,32], index: 1, kind: input, shape index: {}]
  %s2 = inlined_call_operand.vmem [shape: f32[1,32], index: 2, kind: input, shape index: {}]
  %s3 = inlined_call_operand.vmem [shape: f32[32,4], index: 3, kind: input, shape index: {}]
  %s4 = inlined_call_operand.vmem [shape: f32[1,4], index: 4, kind: input, shape index: {}]
  %s5 = inlined_call_operand.vmem [shape: f32[8,4], index: 5, kind: output, shape index: {}]
  %s6 = sld [smem:[#allocation0]]
  $region30: #{mlp_forward.1} parent=0
    _
  %s8 = ssub.s32 1, %s6
  %s9 = scalar_select 0, %s8, %s6
  // Predicated region
  $region2: #{mlp_forward.1} parent=0 // pred_check
    _
  $region3: #{mlp_forward.1} parent=0 // pred_check_branch
    %11 = sbr.rel (0) target = $region5
  $region4: #{mlp_forward.1} parent=0 // pred_region
    _
  $region5: #{mlp_forward.1} parent=0 // pred_fallthru
    _
  // Predicated region
  $region6: #{mlp_forward.1} parent=0 // pred_check
    _
  $region7: #{mlp_forward.1} parent=0 // pred_check_branch
    %13 = sbr.rel (0) target = $region9
  $region8: #{mlp_forward.1} parent=0 // pred_region
    _
  $region9: #{mlp_forward.1} parent=0 // pred_fallthru
    _
  // Predicated region
  $region10: #{mlp_forward.1} parent=0 // pred_check
    _
  $region11: #{mlp_forward.1} parent=0 // pred_check_branch
    %15 = sbr.rel (0) target = $region13
  $region12: #{mlp_forward.1} parent=0 // pred_region
    _
  $region13: #{mlp_forward.1} parent=0 // pred_fallthru
    _
  // Predicated region
  $region14: #{mlp_forward.1} parent=0 // pred_check
    _
  $region15: #{mlp_forward.1} parent=0 // pred_check_branch
    %17 = sbr.rel (0) target = $region17
  $region16: #{mlp_forward.1} parent=0 // pred_region
    _
  $region17: #{mlp_forward.1} parent=0 // pred_fallthru
    _
  // Predicated region
  $region18: #{mlp_forward.1} parent=0 // pred_check
    _
  $region19: #{mlp_forward.1} parent=0 // pred_check_branch
    %19 = sbr.rel (0) target = $region21
  $region20: #{mlp_forward.1} parent=0 // pred_region
    _
  $region21: #{mlp_forward.1} parent=0 // pred_fallthru
    _
  %v20 = vld [vmem:[%s0] sm:$0xff]
  %v21 = vld [vmem:[%s1] sm:$0xff]
  %v22 = vld [vmem:[%s1 + $0x8] sm:$0xff]
  %v23 = vld [vmem:[%s2] sm:$0x1]
  %v25 = vperm.slane %v23, 0
  %vm27 = vcmask 130048
  %v29 = vsel %vm27, %v20, 0
  %31 = vmatpush.msra.mxu0 0.0
  %32 = vmatpush.msra.mxu0 0.0
  %33 = vmatpush.msra.mxu0 0.0
  %34 = vmatpush.msra.mxu0 0.0
  %35 = vmatpush.msra.mxu0 0.0
  %36 = vmatpush.msra.mxu0 0.0
  %37 = vmatpush.msra.mxu0 0.0
  %38 = vmatpush.msra.mxu0 0.0
  %39 = vmatpush.msra.mxu0 0.0
  %40 = vmatpush.msra.mxu0 0.0
  %41 = vmatpush.msra.mxu0 0.0
  %42 = vmatpush.msra.mxu0 0.0
  %43 = vmatpush.msra.mxu0 0.0
  %44 = vmatpush.msra.mxu0 0.0
  %45 = vmatpush.msra.mxu0 %v22
  %46 = vmatpush.msra.mxu0 %v21
  %47 = vmatmul.f32.gmra.mxu0 %v29
  %v48 = vpop.f32.mrf.mxu0
  %v49 = vadd.f32 %v25, %v48
  %50 = vdwg.mxu0
  %v51 = vmax.f32 %v49, 0.0
  %v52 = vld [vmem:[%s3] sm:$0xff]
  %v53 = vld [vmem:[%s3 + $0x8] sm:$0xff]
  %v54 = vld [vmem:[%s3 + $0x10] sm:$0xff]
  %v55 = vld [vmem:[%s3 + $0x18] sm:$0xff]
  %v56 = vld [vmem:[%s4] sm:$0x1]
  %v58 = vperm.slane %v56, 0
  %vm60 = vcmask 261120
  %v62 = vsel %vm60, %v51, 0
  %64 = vmatpush.msra.mxu0 0.0
  %65 = vmatpush.msra.mxu0 0.0
  %66 = vmatpush.msra.mxu0 0.0
  %67 = vmatpush.msra.mxu0 0.0
  %68 = vmatpush.msra.mxu0 0.0
  %69 = vmatpush.msra.mxu0 0.0
  %70 = vmatpush.msra.mxu0 0.0
  %71 = vmatpush.msra.mxu0 0.0
  %72 = vmatpush.msra.mxu0 0.0
  %73 = vmatpush.msra.mxu0 0.0
  %74 = vmatpush.msra.mxu0 0.0
  %75 = vmatpush.msra.mxu0 0.0
  %76 = vmatpush.msra.mxu0 %v55
  %77 = vmatpush.msra.mxu0 %v54
  %78 = vmatpush.msra.mxu0 %v53
  %79 = vmatpush.msra.mxu0 %v52
  %80 = vmatmul.f32.gmra.mxu0 %v62
  %v81 = vpop.f32.mrf.mxu0
  %v82 = vadd.f32 %v58, %v81
  %83 = vdwg.mxu0
  %vm84 = vcmask 31744
  %85 = vst.msk [vmem:[%s5] sm:$0xff] %vm84, %v82
  // Predicated region
  $region22: #{mlp_forward.1} parent=0 // pred_check
    _
  $region23: #{mlp_forward.1} parent=0 // pred_check_branch
    %87 = sbr.rel (0) target = $region25
  $region24: #{mlp_forward.1} parent=0 // pred_region
    _
  $region25: #{mlp_forward.1} parent=0 // pred_fallthru
    _
  // Predicated region
  $region26: #{mlp_forward.1} parent=0 // pred_check
    _
  $region27: #{mlp_forward.1} parent=0 // pred_check_branch
    %89 = sbr.rel (0) target = $region29
  $region28: #{mlp_forward.1} parent=0 // pred_region
    _
  $region29: #{mlp_forward.1} parent=0 // pred_fallthru
    _

</llo_original>
